<compile_context>
chip_gen: v7x
topology: tpu7x:2x2x1
jax: 0.10.0
libtpu: 0.0.40
codegen_flags: <defaults>
</compile_context>

<pallas_src>
import jax
import jax.numpy as jnp
from jax.experimental import pallas as pl
from jax.experimental.pallas import tpu as pltpu


def _exp_kernel(x_ref, o_ref):
    # Pure elementwise exp on the whole VMEM tile (EUP path; kernel is
    # HBM-bound, so nothing else is done here).
    o_ref[...] = jnp.exp(x_ref[...])


def _num_tensorcores() -> int:
    """Best-effort TensorCores per chip (2 on v7x, 1 on v5e/v6e)."""
    try:
        dev = jax.devices()[0]
        nc = getattr(dev, "num_cores", None)
        if isinstance(nc, int) and nc >= 1:
            return min(nc, 2)
        kind = str(getattr(dev, "device_kind", "")).lower()
        if "v7" in kind:
            return 2
    except Exception:
        pass
    return 1


def exp_pallas(x: jax.Array, *, target_block_bytes: int = 4 << 20) -> jax.Array:
    """Computes exp(x) with a Pallas TPU kernel for any shape."""
    orig_shape = x.shape

    # torch.exp promotes integer/bool inputs to floating point; mirror that
    # rather than storing a float result into an integer ref.
    if not jnp.issubdtype(x.dtype, jnp.floating):
        x = x.astype(jnp.float32)
    dtype = x.dtype

    n = x.size
    if n == 0:
        return jnp.exp(x).reshape(orig_shape)

    itemsize = jnp.dtype(dtype).itemsize
    # Minimum sublane count per dtype width (sub-32-bit dtypes pack sublanes).
    min_sub = {4: 8, 2: 16, 1: 32}.get(itemsize, 8)

    # Lane-dense width: largest multiple of 128 (<= 2048) dividing n exactly,
    # so the common case needs no wrapper-side padding at all.
    lanes = 128
    for m in range(16, 0, -1):            # 2048, 1920, ..., 128
        cand = 128 * m
        if n % cand == 0:
            lanes = cand
            break

    rows = pl.cdiv(n, lanes)
    padded = rows * lanes

    flat = x.reshape(-1)
    if padded != n:
        # Rare path (n not a multiple of 128): one small pad of the flat tail.
        flat = jnp.pad(flat, (0, padded - n))
    x2d = flat.reshape(rows, lanes)

    # Row tile: ~target_block_bytes per block, a multiple of min_sub rows.
    # Double-buffered input + output = 4x block bytes <= 16 MiB, within the
    # 32 MiB scoped-VMEM limit requested below on every generation.
    max_tr = max(min_sub,
                 (target_block_bytes // (lanes * itemsize)) // min_sub * min_sub)

    if rows <= max_tr:
        tr = rows                          # single full-extent block (always legal)
        n_blocks = 1
    else:
        tr = max_tr                        # multiple of min_sub; last block masked
        n_blocks = pl.cdiv(rows, tr)

    # Megacore: only force a split on multi-TensorCore chips (v7x), and give
    # each core >=2 grid steps so the next input DMA overlaps writeback.
    n_cores = _num_tensorcores()
    if n_cores > 1 and n_blocks < 2 * n_cores and rows >= 2 * n_cores * min_sub:
        want = 2 * n_cores
        tr = max(min_sub, pl.cdiv(pl.cdiv(rows, want), min_sub) * min_sub)
        n_blocks = pl.cdiv(rows, tr)

    out2d = pl.pallas_call(
        _exp_kernel,
        out_shape=jax.ShapeDtypeStruct((rows, lanes), dtype),
        grid_spec=pltpu.PrefetchScalarGridSpec(
            num_scalar_prefetch=0,
            grid=(n_blocks,),
            in_specs=[pl.BlockSpec((tr, lanes), lambda i: (i, 0))],
            out_specs=pl.BlockSpec((tr, lanes), lambda i: (i, 0)),
        ),
        compiler_params=pltpu.CompilerParams(
            dimension_semantics=("parallel",),
            vmem_limit_bytes=32 << 20,
        ),
        cost_estimate=pl.CostEstimate(
            flops=0, transcendentals=n, bytes_accessed=2 * n * itemsize),
    )(x2d)

    out = out2d.reshape(-1)
    if padded != n:
        out = out[:n]
    return out.reshape(orig_shape)


if __name__ == "__main__":
    key = jax.random.PRNGKey(0)
    # Small NCHW-style input consistent with the module's forward.
    x = jax.random.normal(key, (2, 4, 16, 16), dtype=jnp.float32)

    y = exp_pallas(x)
    jax.block_until_ready(y)

    # Verify against the pure-JAX reference.
    y_ref = jnp.exp(x)
    assert y.shape == x.shape and y.dtype == x.dtype
    assert jnp.allclose(y, y_ref, rtol=1e-6, atol=1e-6)

    print("KERNEL_OK")
</pallas_src>

<mosaic_0001>
module attributes {stable_mosaic.version = 11 : i64} {
  func.func @_exp_kernel(%arg0: i32, %arg1: memref<1x2048xf32, #tpu.memory_space<vmem>>, %arg2: memref<1x2048xf32, #tpu.memory_space<vmem>>) attributes {dimension_semantics = [#tpu.dimension_semantics<parallel>], iteration_bounds = array<i64: 1>, scalar_prefetch = 0 : i64, scratch_operands = 0 : i64, tpu.core_type = #tpu.core_type<tc>, window_params = [{transform_indices = @transform_0, window_bounds = array<i64: 1, 2048>}, {transform_indices = @transform_1, window_bounds = array<i64: 1, 2048>}]} {
    %c0 = arith.constant 0 : index
    %c0_0 = arith.constant 0 : index
    %0 = vector.load %arg1[%c0, %c0_0] : memref<1x2048xf32, #tpu.memory_space<vmem>>, vector<1x2048xf32>
    %1 = math.exp %0 : vector<1x2048xf32>
    %c0_1 = arith.constant 0 : index
    %c0_2 = arith.constant 0 : index
    %2 = vector.load %arg2[%c0_1, %c0_2] : memref<1x2048xf32, #tpu.memory_space<vmem>>, vector<1x2048xf32>
    tpu.vector_store %arg2[%c0_1, %c0_2], %1 {strides = array<i32>} : memref<1x2048xf32, #tpu.memory_space<vmem>>, vector<1x2048xf32>,
    return
  }
  func.func @transform_0(%arg0: i32) -> (i32, i32) {
    %c0_i32 = arith.constant 0 : i32
    %c0_i32_0 = arith.constant 0 : i32
    return %arg0, %c0_i32 : i32, i32
  }
  func.func @transform_1(%arg0: i32) -> (i32, i32) {
    %c0_i32 = arith.constant 0 : i32
    %c0_i32_0 = arith.constant 0 : i32
    return %arg0, %c0_i32 : i32, i32
  }
}

</mosaic_0001>

<llo_original>
// kernel: tpu_custom_call.1
$region0: #{tpu_custom_call.1}
  #allocation0 [shape = 'u32[]', space=smem, size = 0x4, offset = 0x4, fixed_abs, tag = 'smem constant byte address 0x4 - core index']
  #allocation1 [shape = 'u32[144,128]{1,0:T(1,128)}', space=vmem, size = 0x12000, scoped, tag = 'internal scratch']
  %s0 = inlined_call_operand.hbm [shape: f32[1,2048], index: 0, kind: input, shape index: {}]
  %s1 = inlined_call_operand.hbm [shape: f32[1,2048], index: 1, kind: output, shape index: {}]
  %s2 = sld [smem:[#allocation0]]
  $region18: #{tpu_custom_call.1} parent=0
    _
  %s4 = ssub.s32 1, %s2
  %s5 = scalar_select 0, %s4, %s2
  $region1: #{tpu_custom_call.1} parent=0
    #allocation2 [shape = 'u8[8192]{0}', space=vmem, size = 0x2000, scoped, tag = 'input window, operand 0, single buffered']
    #allocation3 [shape = 's32[1]{0}', space=sflag, size = 0x4, scoped, tag = 'scoped memory for tpu_custom_call.1']
    #allocation4 [shape = 's32[1]{0}', space=sflag, size = 0x4, scoped, tag = 'scoped memory for tpu_custom_call.1']
    #allocation5 [shape = 'u8[8192]{0}', space=vmem, size = 0x2000, scoped, tag = 'output window, operand 0, single buffered']
    %6 = vsyncpa [#allocation3], 0
    %7 = vsyncpa [#allocation4], 0
    // Predicated region
    $region2: #{tpu_custom_call.1} parent=1 // pred_check
      _
    $region3: #{tpu_custom_call.1} parent=1 // pred_check_branch
      %9 = sbr.rel (0) target = $region5
    $region4: #{tpu_custom_call.1} parent=1 // pred_region
      %s11 = ssub.s32 256, 256
      %12 = vsyncadd [#allocation3], %s11
      %s14 = sshll.u32 [#allocation2], 4
      %s15 = int_to_ptr.vmem [resolvable:$true] %s14
      %17 = dma.hbm_to_vmem [thread:$0]  %s0, 256, %s15, [#allocation3]
    $region5: #{tpu_custom_call.1} parent=1 // pred_fallthru
      _
    // Predicated region
    $region6: #{tpu_custom_call.1} parent=1 // pred_check
      _
    $region7: #{tpu_custom_call.1} parent=1 // pred_check_branch
      %19 = sbr.rel (0) target = $region9
    $region8: #{tpu_custom_call.1} parent=1 // pred_region
      %20 = dma.done [#allocation3], 256
    $region9: #{tpu_custom_call.1} parent=1 // pred_fallthru
      _
    %v21 = vld [vmem:[#allocation2] sm:$0xff]
    %v22 = vld [vmem:[#allocation2 + $0x8] sm:$0xff]
    %v23 = vmul.f32 %v21, 1.442695
    %v24 = vpow.pop %v23
    %v25 = vmul.f32 %v22, 1.442695
    %v26 = vpow.pop %v25
    %27 = vst [vmem:[#allocation5] sm:$0xff] %v24
    %28 = vst [vmem:[#allocation5 + $0x8] sm:$0xff] %v26
    // Predicated region
    $region10: #{tpu_custom_call.1} parent=1 // pred_check
      _
    $region11: #{tpu_custom_call.1} parent=1 // pred_check_branch
      %30 = sbr.rel (0) target = $region13
    $region12: #{tpu_custom_call.1} parent=1 // pred_region
      %s32 = ssub.s32 256, 256
      %33 = vsyncadd [#allocation4], %s32
      %s35 = sshll.u32 [#allocation5], 4
      %s36 = int_to_ptr.vmem [resolvable:$true] %s35
      %38 = dma.vmem_to_hbm [thread:$0]  %s36, 256, %s1, [#allocation4]
    $region13: #{tpu_custom_call.1} parent=1 // pred_fallthru
      _
    // Predicated region
    $region14: #{tpu_custom_call.1} parent=1 // pred_check
      _
    $region15: #{tpu_custom_call.1} parent=1 // pred_check_branch
      %40 = sbr.rel (0) target = $region17
    $region16: #{tpu_custom_call.1} parent=1 // pred_region
      %41 = dma.done [#allocation4], 256
    $region17: #{tpu_custom_call.1} parent=1 // pred_fallthru
      _
    %42 = vsyncpa [#allocation3], 1
    %43 = vsyncpa [#allocation4], 1

</llo_original>
